<compile_context>
chip_gen: v7x
topology: tpu7x:2x2x1
jax: 0.10.0
libtpu: 0.0.40
codegen_flags: <defaults>
</compile_context>

<pallas_src>
import numpy as np
import jax
import jax.numpy as jnp
from jax.experimental import pallas as pl
from jax.experimental.pallas import tpu as pltpu


def _round_up(x, m=128):
    return ((x + m - 1) // m) * m


# ---------------------------------------------------------------------------
# Fused Pallas kernel: conv pyramid (as operator matmuls) + MLP head, batched
# ---------------------------------------------------------------------------
def _critic_fused_kernel(x_ref, prod_ref,
                         a1_ref, c1_ref, a2_ref, c2_ref, a3_ref, c3_ref,
                         w1_ref, b1_ref, w2_ref, b2_ref, w3_ref, b3_ref,
                         o_ref):
    f32, bf16 = jnp.float32, jnp.bfloat16

    def mxu(x, w_ref):
        # bf16 x bf16 -> f32 accumulate on the MXU
        return jnp.dot(x.astype(bf16), w_ref[...], preferred_element_type=f32)

    # conv1..conv3 (3x3 / stride 2 / pad 1, weight shared across sheets) as
    # block-diagonal operator matmuls; pad lanes stay exactly zero through
    # bias (zero in pad lanes) + ReLU and hit zero weight rows downstream.
    z = x_ref[...]                                             # (TB, D0p) f32, {0,1}
    z = jnp.maximum(mxu(z, a1_ref) + c1_ref[...], 0.0)
    z = jnp.maximum(mxu(z, a2_ref) + c2_ref[...], 0.0)
    z = jnp.maximum(mxu(z, a3_ref) + c3_ref[...], 0.0)
    # implicit concat [cnn_out, product_features]: the product-slot lanes of z are
    # zero and the cnn lanes of prod are zero, so one VPU add realizes the concat.
    z = z + prod_ref[...]
    # fc1, fc2
    h = jnp.maximum(mxu(z, w1_ref) + b1_ref[...], 0.0)
    h = jnp.maximum(mxu(h, w2_ref) + b2_ref[...], 0.0)
    # fc3 (H -> 1) as f32 VPU multiply + XLU lane reduce; lane-dense output slab
    # (value broadcast across 128 lanes; column 0 is read back by the wrapper).
    val = jnp.sum(h * w3_ref[...], axis=1, keepdims=True)      # (TB, 1)
    o_ref[...] = jnp.broadcast_to(val, o_ref.shape) + b3_ref[...]


# ---------------------------------------------------------------------------
# CriticNetwork
# ---------------------------------------------------------------------------
class CriticNetworkPallas:
    def __init__(self, num_sheet, max_w, max_h, max_product_type,
                 max_product_per_type, hidden_dim, key, batch_tile=16):
        # batch_tile: rows per grid step.  Multiple of 8 sublanes (16 matches the
        # bf16 sublane pack); use 128-256 for production throughput on v6e/v7x.
        assert batch_tile % 8 == 0, "batch_tile must be a multiple of 8"
        self.num_sheet = num_sheet
        self.max_w = max_w
        self.max_h = max_h
        self.max_product_type = max_product_type
        self.max_product_per_type = max_product_per_type
        self.hidden_dim = hidden_dim
        self.batch_tile = batch_tile

        # spatial pyramid: out = (in - 1)//2 + 1 for k=3, s=2, p=1
        heights = [max_w]
        widths = [max_h]
        for _ in range(3):
            heights.append((heights[-1] - 1) // 2 + 1)
            widths.append((widths[-1] - 1) // 2 + 1)
        sheet_sizes = [heights[i] * widths[i] for i in range(4)]
        dims = [num_sheet * s for s in sheet_sizes]          # D0..D3 flattened over sheets

        cnn_output_dim = num_sheet * (max_w // 8 + 1) * (max_h // 8 + 1)  # PyTorch formula
        product_output_dim = 6 * max_product_type
        self.product_output_dim = product_output_dim
        # The original module only works when its fc1 sizing formula matches the true
        # conv-pyramid output; mirror that requirement here.
        assert dims[3] == cnn_output_dim, \
            "fc1 sizing formula disagrees with actual conv output (as in the PyTorch module)"

        self.d0 = dims[0]
        self.d0p = _round_up(dims[0])
        d1p = _round_up(dims[1])
        d2p = _round_up(dims[2])
        self.d3 = dims[3]
        # conv3 output row is padded wide enough to also hold the product features,
        # so the [cnn_out, product_features] concat is a VPU add into the pad lanes.
        self.d3p = _round_up(dims[3] + product_output_dim)
        hp = _round_up(hidden_dim)
        dims_pad = [self.d0p, d1p, d2p, self.d3p]

        # -------- parameter init (matches shapes / fan-in of the PyTorch module) ----
        def uni(k, shape, fan_in):
            bound = 1.0 / np.sqrt(fan_in)
            return np.asarray(jax.random.uniform(k, shape, jnp.float32, -bound, bound))

        def bf16_round(a):
            # MXU-operand params live in bf16; keep the f32 master copies bf16-rounded
            # so the fused kernel and the numpy reference use identical parameters.
            return np.asarray(jnp.asarray(a, jnp.bfloat16).astype(jnp.float32))

        ks = jax.random.split(key, 12)
        input_dim = cnn_output_dim + product_output_dim
        self.conv_w = [bf16_round(uni(ks[i], (3, 3), 9)) for i in range(3)]
        self.conv_b = [float(uni(ks[3 + i], (), 9)) for i in range(3)]
        self.w1_np = bf16_round(uni(ks[6], (input_dim, hidden_dim), input_dim))  # (in, out)
        self.b1_np = uni(ks[7], (hidden_dim,), input_dim)
        self.w2_np = bf16_round(uni(ks[8], (hidden_dim, hidden_dim), hidden_dim))
        self.b2_np = uni(ks[9], (hidden_dim,), hidden_dim)
        self.w3_np = uni(ks[10], (hidden_dim,), hidden_dim)
        self.b3_np = uni(ks[11], (1,), hidden_dim)

        # -------- lower each conv to a block-diagonal operator matrix ---------------
        def conv_mat(w, hin, win, hout, wout):
            A = np.zeros((hin * win, hout * wout), np.float32)
            for io in range(hout):
                for jo in range(wout):
                    o = io * wout + jo
                    for ki in range(3):
                        ii = 2 * io + ki - 1
                        if not (0 <= ii < hin):
                            continue
                        for kj in range(3):
                            jj = 2 * jo + kj - 1
                            if 0 <= jj < win:
                                A[ii * win + jj, o] = w[ki, kj]
            return A

        conv_mats, conv_bias_rows = [], []
        for l in range(3):
            A = conv_mat(self.conv_w[l], heights[l], widths[l], heights[l + 1], widths[l + 1])
            sin, sout = A.shape
            Ablk = np.zeros((dims_pad[l], dims_pad[l + 1]), np.float32)
            for n in range(num_sheet):
                Ablk[n * sin:(n + 1) * sin, n * sout:(n + 1) * sout] = A
            brow = np.zeros((1, dims_pad[l + 1]), np.float32)
            brow[0, :num_sheet * sout] = self.conv_b[l]
            conv_mats.append(Ablk)
            conv_bias_rows.append(brow)

        # -------- lane-padded MLP weights (fc1 takes the folded [cnn | prod] row) ---
        W1 = np.zeros((self.d3p, hp), np.float32)
        W1[:cnn_output_dim, :hidden_dim] = self.w1_np[:cnn_output_dim]
        W1[cnn_output_dim:cnn_output_dim + product_output_dim, :hidden_dim] = \
            self.w1_np[cnn_output_dim:]
        B1 = np.zeros((1, hp), np.float32); B1[0, :hidden_dim] = self.b1_np
        W2 = np.zeros((hp, hp), np.float32); W2[:hidden_dim, :hidden_dim] = self.w2_np
        B2 = np.zeros((1, hp), np.float32); B2[0, :hidden_dim] = self.b2_np
        W3 = np.zeros((1, hp), np.float32); W3[0, :hidden_dim] = self.w3_np
        B3 = np.full((1, 128), float(self.b3_np[0]), np.float32)

        bf, f32 = jnp.bfloat16, jnp.float32
        self._params = (
            jnp.asarray(conv_mats[0], bf), jnp.asarray(conv_bias_rows[0], f32),
            jnp.asarray(conv_mats[1], bf), jnp.asarray(conv_bias_rows[1], f32),
            jnp.asarray(conv_mats[2], bf), jnp.asarray(conv_bias_rows[2], f32),
            jnp.asarray(W1, bf), jnp.asarray(B1, f32),
            jnp.asarray(W2, bf), jnp.asarray(B2, f32),
            jnp.asarray(W3, f32), jnp.asarray(B3, f32),
        )

        self._forward_jit = jax.jit(self._build_forward())

    # ---------------- device-side forward: preprocessing + fused pallas_call --------
    def _build_forward(self):
        tb = self.batch_tile
        d0, d0p = self.d0, self.d0p
        d3, d3p = self.d3, self.d3p
        pdim = self.product_output_dim

        def fwd(stocks_int, prod_feats, params):
            b = stocks_int.shape[0]
            b_pad = _round_up(b, tb)
            # binarize (-1 == empty cell), flatten sheet-major, pad rows/lanes
            x = (stocks_int == -1).astype(jnp.float32).reshape(b, -1)     # (b, d0)
            x = jnp.pad(x, ((0, b_pad - b), (0, d0p - d0)))
            # product features placed at lane offset d3 of the conv3-output row
            prod = jnp.pad(prod_feats.astype(jnp.float32),
                           ((0, b_pad - b), (d3, d3p - d3 - pdim)))

            batch_spec = lambda width: pl.BlockSpec((tb, width), lambda i: (i, 0))
            # constant index maps -> weights stay VMEM-resident across grid steps
            const_specs = [pl.BlockSpec(p.shape, lambda i: (0, 0)) for p in params]

            out = pl.pallas_call(
                _critic_fused_kernel,
                out_shape=jax.ShapeDtypeStruct((b_pad, 128), jnp.float32),
                grid_spec=pltpu.PrefetchScalarGridSpec(
                    num_scalar_prefetch=0,
                    grid=(b_pad // tb,),
                    in_specs=[batch_spec(d0p), batch_spec(d3p)] + const_specs,
                    out_specs=pl.BlockSpec((tb, 128), lambda i: (i, 0)),
                ),
                compiler_params=pltpu.CompilerParams(
                    dimension_semantics=("parallel",)),
            )(x, prod, *params)
            return out[:b, 0]        # (b,) values; stays on device until read
        return fwd

    # ---------------- host-side packing (same math as the PyTorch module) -----------
    def _product_features(self, observation_products):
        feats = []
        for product in observation_products:
            length, width = product['size']
            quantity = product['quantity']
            feats.append([length, width, quantity])
            feats.append([width, length, quantity])
        while len(feats) < 2 * self.max_product_type:
            feats.append([0.0, 0.0, 0.0])
        feats = np.asarray(feats[:2 * self.max_product_type], np.float32)
        return feats.reshape(-1)

    def forward_batch(self, observations):
        """observations: list of (observation_stocks, observation_products).
        Returns a (B,) device array of state values (one fused pallas_call)."""
        stocks = np.stack([np.stack([np.asarray(s) for s in obs_s]).astype(np.int32)
                           for obs_s, _ in observations])                  # (B, N, H, W)
        prods = np.stack([self._product_features(obs_p) for _, obs_p in observations])
        return self._forward_jit(jnp.asarray(stocks), jnp.asarray(prods), self._params)

    def __call__(self, observation_stocks, observation_products):
        # same semantics as CriticNetwork.forward: value.squeeze(1) -> shape (1,)
        return self.forward_batch([(observation_stocks, observation_products)])


# ---------------------------------------------------------------------------
# Pure-numpy reference (unfused, literal conv) used to validate the fused kernel
# ---------------------------------------------------------------------------
def _reference_forward(net, observation_stocks, observation_products):
    stocks_np = np.stack([np.asarray(s) for s in observation_stocks])
    x = (stocks_np == -1).astype(np.float32)                          # (N, H, W)
    for w, b in zip(net.conv_w, net.conv_b):
        n, h, wd = x.shape
        ho, wo = (h - 1) // 2 + 1, (wd - 1) // 2 + 1
        xp = np.pad(x, ((0, 0), (1, 1), (1, 1)))
        out = np.zeros((n, ho, wo), np.float32)
        for ki in range(3):
            for kj in range(3):
                out += w[ki, kj] * xp[:, ki:ki + 2 * ho:2, kj:kj + 2 * wo:2]
        x = np.maximum(out + b, 0.0)
    cnn = x.reshape(1, -1)
    feats = []
    for p in observation_products:
        l, wd_ = p['size']; q = p['quantity']
        feats.append([l, wd_, q]); feats.append([wd_, l, q])
    while len(feats) < 2 * net.max_product_type:
        feats.append([0.0, 0.0, 0.0])
    feats = np.array(feats[:2 * net.max_product_type], np.float32).reshape(1, -1)
    z = np.concatenate([cnn, feats], axis=1)
    h1 = np.maximum(z @ net.w1_np + net.b1_np, 0.0)
    h2 = np.maximum(h1 @ net.w2_np + net.b2_np, 0.0)
    return (h2 @ net.w3_np.reshape(-1, 1) + net.b3_np).reshape(-1)


# ---------------------------------------------------------------------------
if __name__ == "__main__":
    num_sheet, max_w, max_h = 2, 9, 9          # 9 -> (9//8 + 1) matches the conv pyramid
    max_product_type, max_product_per_type = 3, 5
    hidden_dim = 32
    batch = 20                                 # many observations per pallas_call

    key = jax.random.PRNGKey(0)
    k_stock, k_size, k_qty, k_net = jax.random.split(key, 4)

    net = CriticNetworkPallas(num_sheet, max_w, max_h, max_product_type,
                              max_product_per_type, hidden_dim, key=k_net,
                              batch_tile=16)

    # stocks: -1 marks empty cells (as in the gym env), >=0 marks placed products
    stocks_all = np.asarray(jax.random.randint(
        k_stock, (batch, num_sheet, max_w, max_h), -1, 3), np.int32)
    sizes_all = np.asarray(jax.random.randint(k_size, (batch, 2, 2), 1, 6))
    quants_all = np.asarray(jax.random.randint(
        k_qty, (batch, 2), 1, max_product_per_type + 1))

    observations = []
    for b in range(batch):
        obs_stocks = [stocks_all[b, i] for i in range(num_sheet)]
        obs_products = [
            {"size": (float(sizes_all[b, i, 0]), float(sizes_all[b, i, 1])),
             "quantity": float(quants_all[b, i])}
            for i in range(2)]
        observations.append((obs_stocks, obs_products))

    # batched evaluation: every observation goes through one fused pallas_call
    values = jax.block_until_ready(net.forward_batch(observations))
    assert values.shape == (batch,) and values.dtype == jnp.float32

    # single-observation API (same semantics as CriticNetwork.forward -> shape (1,))
    v0 = jax.block_until_ready(net(observations[0][0], observations[0][1]))
    assert v0.shape == (1,)

    ref = np.array([_reference_forward(net, s, p) for s, p in observations]).reshape(-1)
    assert np.allclose(np.asarray(values), ref, rtol=2e-2, atol=2e-2), (np.asarray(values), ref)
    assert np.allclose(np.asarray(v0), ref[:1], rtol=2e-2, atol=2e-2), (np.asarray(v0), ref[:1])

    print("KERNEL_OK")
</pallas_src>

<mosaic_0001>
module attributes {stable_mosaic.version = 11 : i64} {
  func.func @_critic_fused_kernel(%arg0: i32, %arg1: memref<16x256xf32, #tpu.memory_space<vmem>>, %arg2: memref<16x128xf32, #tpu.memory_space<vmem>>, %arg3: memref<256x128xbf16, #tpu.memory_space<vmem>>, %arg4: memref<1x128xf32, #tpu.memory_space<vmem>>, %arg5: memref<128x128xbf16, #tpu.memory_space<vmem>>, %arg6: memref<1x128xf32, #tpu.memory_space<vmem>>, %arg7: memref<128x128xbf16, #tpu.memory_space<vmem>>, %arg8: memref<1x128xf32, #tpu.memory_space<vmem>>, %arg9: memref<128x128xbf16, #tpu.memory_space<vmem>>, %arg10: memref<1x128xf32, #tpu.memory_space<vmem>>, %arg11: memref<128x128xbf16, #tpu.memory_space<vmem>>, %arg12: memref<1x128xf32, #tpu.memory_space<vmem>>, %arg13: memref<1x128xf32, #tpu.memory_space<vmem>>, %arg14: memref<1x128xf32, #tpu.memory_space<vmem>>, %arg15: memref<16x128xf32, #tpu.memory_space<vmem>>) attributes {dimension_semantics = [#tpu.dimension_semantics<parallel>], iteration_bounds = array<i64: 2>, scalar_prefetch = 0 : i64, scratch_operands = 0 : i64, tpu.core_type = #tpu.core_type<tc>, window_params = [{transform_indices = @transform_0, window_bounds = array<i64: 16, 256>}, {transform_indices = @transform_1, window_bounds = array<i64: 16, 128>}, {pipeline_mode = #tpu.pipeline_mode<synchronous>, transform_indices = @transform_2, window_bounds = array<i64: 256, 128>}, {pipeline_mode = #tpu.pipeline_mode<synchronous>, transform_indices = @transform_3, window_bounds = array<i64: 1, 128>}, {pipeline_mode = #tpu.pipeline_mode<synchronous>, transform_indices = @transform_4, window_bounds = array<i64: 128, 128>}, {pipeline_mode = #tpu.pipeline_mode<synchronous>, transform_indices = @transform_5, window_bounds = array<i64: 1, 128>}, {pipeline_mode = #tpu.pipeline_mode<synchronous>, transform_indices = @transform_6, window_bounds = array<i64: 128, 128>}, {pipeline_mode = #tpu.pipeline_mode<synchronous>, transform_indices = @transform_7, window_bounds = array<i64: 1, 128>}, {pipeline_mode = #tpu.pipeline_mode<synchronous>, transform_indices = @transform_8, window_bounds = array<i64: 128, 128>}, {pipeline_mode = #tpu.pipeline_mode<synchronous>, transform_indices = @transform_9, window_bounds = array<i64: 1, 128>}, {pipeline_mode = #tpu.pipeline_mode<synchronous>, transform_indices = @transform_10, window_bounds = array<i64: 128, 128>}, {pipeline_mode = #tpu.pipeline_mode<synchronous>, transform_indices = @transform_11, window_bounds = array<i64: 1, 128>}, {pipeline_mode = #tpu.pipeline_mode<synchronous>, transform_indices = @transform_12, window_bounds = array<i64: 1, 128>}, {pipeline_mode = #tpu.pipeline_mode<synchronous>, transform_indices = @transform_13, window_bounds = array<i64: 1, 128>}, {transform_indices = @transform_14, window_bounds = array<i64: 16, 128>}]} {
    %c0 = arith.constant 0 : index
    %c0_0 = arith.constant 0 : index
    %0 = vector.load %arg1[%c0, %c0_0] : memref<16x256xf32, #tpu.memory_space<vmem>>, vector<16x256xf32>
    %1 = arith.truncf %0 : vector<16x256xf32> to vector<16x256xbf16>
    %c0_1 = arith.constant 0 : index
    %c0_2 = arith.constant 0 : index
    %2 = vector.load %arg3[%c0_1, %c0_2] : memref<256x128xbf16, #tpu.memory_space<vmem>>, vector<256x128xbf16>
    %cst = arith.constant dense<0.000000e+00> : vector<16x128xf32>
    %3 = tpu.matmul %1, %2, %cst {dimension_numbers = #tpu.dot_dimension_numbers<[1], [0], [0], [1], [0, 0, 1, 1], [], []>} : vector<16x256xbf16>, vector<256x128xbf16>, vector<16x128xf32> -> vector<16x128xf32>
    %c0_3 = arith.constant 0 : index
    %c0_4 = arith.constant 0 : index
    %4 = vector.load %arg4[%c0_3, %c0_4] : memref<1x128xf32, #tpu.memory_space<vmem>>, vector<1x128xf32>
    %5 = vector.broadcast %4 : vector<1x128xf32> to vector<16x128xf32>
    %6 = arith.addf %3, %5 : vector<16x128xf32>
    %cst_5 = arith.constant 0.000000e+00 : f32
    %7 = vector.broadcast %cst_5 : f32 to vector<16x128xf32>
    %8 = arith.maximumf %6, %7 : vector<16x128xf32>
    %9 = arith.truncf %8 : vector<16x128xf32> to vector<16x128xbf16>
    %c0_6 = arith.constant 0 : index
    %c0_7 = arith.constant 0 : index
    %10 = vector.load %arg5[%c0_6, %c0_7] : memref<128x128xbf16, #tpu.memory_space<vmem>>, vector<128x128xbf16>
    %cst_8 = arith.constant dense<0.000000e+00> : vector<16x128xf32>
    %11 = tpu.matmul %9, %10, %cst_8 {dimension_numbers = #tpu.dot_dimension_numbers<[1], [0], [0], [1], [0, 0, 1, 1], [], []>} : vector<16x128xbf16>, vector<128x128xbf16>, vector<16x128xf32> -> vector<16x128xf32>
    %c0_9 = arith.constant 0 : index
    %c0_10 = arith.constant 0 : index
    %12 = vector.load %arg6[%c0_9, %c0_10] : memref<1x128xf32, #tpu.memory_space<vmem>>, vector<1x128xf32>
    %13 = vector.broadcast %12 : vector<1x128xf32> to vector<16x128xf32>
    %14 = arith.addf %11, %13 : vector<16x128xf32>
    %cst_11 = arith.constant 0.000000e+00 : f32
    %15 = vector.broadcast %cst_11 : f32 to vector<16x128xf32>
    %16 = arith.maximumf %14, %15 : vector<16x128xf32>
    %17 = arith.truncf %16 : vector<16x128xf32> to vector<16x128xbf16>
    %c0_12 = arith.constant 0 : index
    %c0_13 = arith.constant 0 : index
    %18 = vector.load %arg7[%c0_12, %c0_13] : memref<128x128xbf16, #tpu.memory_space<vmem>>, vector<128x128xbf16>
    %cst_14 = arith.constant dense<0.000000e+00> : vector<16x128xf32>
    %19 = tpu.matmul %17, %18, %cst_14 {dimension_numbers = #tpu.dot_dimension_numbers<[1], [0], [0], [1], [0, 0, 1, 1], [], []>} : vector<16x128xbf16>, vector<128x128xbf16>, vector<16x128xf32> -> vector<16x128xf32>
    %c0_15 = arith.constant 0 : index
    %c0_16 = arith.constant 0 : index
    %20 = vector.load %arg8[%c0_15, %c0_16] : memref<1x128xf32, #tpu.memory_space<vmem>>, vector<1x128xf32>
    %21 = vector.broadcast %20 : vector<1x128xf32> to vector<16x128xf32>
    %22 = arith.addf %19, %21 : vector<16x128xf32>
    %cst_17 = arith.constant 0.000000e+00 : f32
    %23 = vector.broadcast %cst_17 : f32 to vector<16x128xf32>
    %24 = arith.maximumf %22, %23 : vector<16x128xf32>
    %c0_18 = arith.constant 0 : index
    %c0_19 = arith.constant 0 : index
    %25 = vector.load %arg2[%c0_18, %c0_19] : memref<16x128xf32, #tpu.memory_space<vmem>>, vector<16x128xf32>
    %26 = arith.addf %24, %25 : vector<16x128xf32>
    %27 = arith.truncf %26 : vector<16x128xf32> to vector<16x128xbf16>
    %c0_20 = arith.constant 0 : index
    %c0_21 = arith.constant 0 : index
    %28 = vector.load %arg9[%c0_20, %c0_21] : memref<128x128xbf16, #tpu.memory_space<vmem>>, vector<128x128xbf16>
    %cst_22 = arith.constant dense<0.000000e+00> : vector<16x128xf32>
    %29 = tpu.matmul %27, %28, %cst_22 {dimension_numbers = #tpu.dot_dimension_numbers<[1], [0], [0], [1], [0, 0, 1, 1], [], []>} : vector<16x128xbf16>, vector<128x128xbf16>, vector<16x128xf32> -> vector<16x128xf32>
    %c0_23 = arith.constant 0 : index
    %c0_24 = arith.constant 0 : index
    %30 = vector.load %arg10[%c0_23, %c0_24] : memref<1x128xf32, #tpu.memory_space<vmem>>, vector<1x128xf32>
    %31 = vector.broadcast %30 : vector<1x128xf32> to vector<16x128xf32>
    %32 = arith.addf %29, %31 : vector<16x128xf32>
    %cst_25 = arith.constant 0.000000e+00 : f32
    %33 = vector.broadcast %cst_25 : f32 to vector<16x128xf32>
    %34 = arith.maximumf %32, %33 : vector<16x128xf32>
    %35 = arith.truncf %34 : vector<16x128xf32> to vector<16x128xbf16>
    %c0_26 = arith.constant 0 : index
    %c0_27 = arith.constant 0 : index
    %36 = vector.load %arg11[%c0_26, %c0_27] : memref<128x128xbf16, #tpu.memory_space<vmem>>, vector<128x128xbf16>
    %cst_28 = arith.constant dense<0.000000e+00> : vector<16x128xf32>
    %37 = tpu.matmul %35, %36, %cst_28 {dimension_numbers = #tpu.dot_dimension_numbers<[1], [0], [0], [1], [0, 0, 1, 1], [], []>} : vector<16x128xbf16>, vector<128x128xbf16>, vector<16x128xf32> -> vector<16x128xf32>
    %c0_29 = arith.constant 0 : index
    %c0_30 = arith.constant 0 : index
    %38 = vector.load %arg12[%c0_29, %c0_30] : memref<1x128xf32, #tpu.memory_space<vmem>>, vector<1x128xf32>
    %39 = vector.broadcast %38 : vector<1x128xf32> to vector<16x128xf32>
    %40 = arith.addf %37, %39 : vector<16x128xf32>
    %cst_31 = arith.constant 0.000000e+00 : f32
    %41 = vector.broadcast %cst_31 : f32 to vector<16x128xf32>
    %42 = arith.maximumf %40, %41 : vector<16x128xf32>
    %c0_32 = arith.constant 0 : index
    %c0_33 = arith.constant 0 : index
    %43 = vector.load %arg13[%c0_32, %c0_33] : memref<1x128xf32, #tpu.memory_space<vmem>>, vector<1x128xf32>
    %44 = vector.broadcast %43 : vector<1x128xf32> to vector<16x128xf32>
    %45 = arith.mulf %42, %44 : vector<16x128xf32>
    %cst_34 = arith.constant dense<0.000000e+00> : vector<16xf32>
    %46 = vector.multi_reduction <add>, %45, %cst_34 [1] : vector<16x128xf32> to vector<16xf32>
    %47 = vector.shape_cast %46 : vector<16xf32> to vector<16x1xf32>
    %48 = vector.shape_cast %47 : vector<16x1xf32> to vector<16x1xf32>
    %49 = vector.broadcast %48 : vector<16x1xf32> to vector<16x128xf32>
    %c0_35 = arith.constant 0 : index
    %c0_36 = arith.constant 0 : index
    %50 = vector.load %arg14[%c0_35, %c0_36] : memref<1x128xf32, #tpu.memory_space<vmem>>, vector<1x128xf32>
    %51 = vector.broadcast %50 : vector<1x128xf32> to vector<16x128xf32>
    %52 = arith.addf %49, %51 : vector<16x128xf32>
    %c0_37 = arith.constant 0 : index
    %c0_38 = arith.constant 0 : index
    %53 = vector.load %arg15[%c0_37, %c0_38] : memref<16x128xf32, #tpu.memory_space<vmem>>, vector<16x128xf32>
    tpu.vector_store %arg15[%c0_37, %c0_38], %52 {strides = array<i32>} : memref<16x128xf32, #tpu.memory_space<vmem>>, vector<16x128xf32>,
    return
  }
  func.func @transform_0(%arg0: i32) -> (i32, i32) {
    %c0_i32 = arith.constant 0 : i32
    %c0_i32_0 = arith.constant 0 : i32
    return %arg0, %c0_i32 : i32, i32
  }
  func.func @transform_1(%arg0: i32) -> (i32, i32) {
    %c0_i32 = arith.constant 0 : i32
    %c0_i32_0 = arith.constant 0 : i32
    return %arg0, %c0_i32 : i32, i32
  }
  func.func @transform_2(%arg0: i32) -> (i32, i32) {
    %c0_i32 = arith.constant 0 : i32
    %c0_i32_0 = arith.constant 0 : i32
    %c0_i32_1 = arith.constant 0 : i32
    return %c0_i32, %c0_i32_0 : i32, i32
  }
  func.func @transform_3(%arg0: i32) -> (i32, i32) {
    %c0_i32 = arith.constant 0 : i32
    %c0_i32_0 = arith.constant 0 : i32
    %c0_i32_1 = arith.constant 0 : i32
    return %c0_i32, %c0_i32_0 : i32, i32
  }
  func.func @transform_4(%arg0: i32) -> (i32, i32) {
    %c0_i32 = arith.constant 0 : i32
    %c0_i32_0 = arith.constant 0 : i32
    %c0_i32_1 = arith.constant 0 : i32
    return %c0_i32, %c0_i32_0 : i32, i32
  }
  func.func @transform_5(%arg0: i32) -> (i32, i32) {
    %c0_i32 = arith.constant 0 : i32
    %c0_i32_0 = arith.constant 0 : i32
    %c0_i32_1 = arith.constant 0 : i32
    return %c0_i32, %c0_i32_0 : i32, i32
  }
  func.func @transform_6(%arg0: i32) -> (i32, i32) {
    %c0_i32 = arith.constant 0 : i32
    %c0_i32_0 = arith.constant 0 : i32
    %c0_i32_1 = arith.constant 0 : i32
    return %c0_i32, %c0_i32_0 : i32, i32
  }
  func.func @transform_7(%arg0: i32) -> (i32, i32) {
    %c0_i32 = arith.constant 0 : i32
    %c0_i32_0 = arith.constant 0 : i32
    %c0_i32_1 = arith.constant 0 : i32
    return %c0_i32, %c0_i32_0 : i32, i32
  }
  func.func @transform_8(%arg0: i32) -> (i32, i32) {
    %c0_i32 = arith.constant 0 : i32
    %c0_i32_0 = arith.constant 0 : i32
    %c0_i32_1 = arith.constant 0 : i32
    return %c0_i32, %c0_i32_0 : i32, i32
  }
  func.func @transform_9(%arg0: i32) -> (i32, i32) {
    %c0_i32 = arith.constant 0 : i32
    %c0_i32_0 = arith.constant 0 : i32
    %c0_i32_1 = arith.constant 0 : i32
    return %c0_i32, %c0_i32_0 : i32, i32
  }
  func.func @transform_10(%arg0: i32) -> (i32, i32) {
    %c0_i32 = arith.constant 0 : i32
    %c0_i32_0 = arith.constant 0 : i32
    %c0_i32_1 = arith.constant 0 : i32
    return %c0_i32, %c0_i32_0 : i32, i32
  }
  func.func @transform_11(%arg0: i32) -> (i32, i32) {
    %c0_i32 = arith.constant 0 : i32
    %c0_i32_0 = arith.constant 0 : i32
    %c0_i32_1 = arith.constant 0 : i32
    return %c0_i32, %c0_i32_0 : i32, i32
  }
  func.func @transform_12(%arg0: i32) -> (i32, i32) {
    %c0_i32 = arith.constant 0 : i32
    %c0_i32_0 = arith.constant 0 : i32
    %c0_i32_1 = arith.constant 0 : i32
    return %c0_i32, %c0_i32_0 : i32, i32
  }
  func.func @transform_13(%arg0: i32) -> (i32, i32) {
    %c0_i32 = arith.constant 0 : i32
    %c0_i32_0 = arith.constant 0 : i32
    %c0_i32_1 = arith.constant 0 : i32
    return %c0_i32, %c0_i32_0 : i32, i32
  }
  func.func @transform_14(%arg0: i32) -> (i32, i32) {
    %c0_i32 = arith.constant 0 : i32
    %c0_i32_0 = arith.constant 0 : i32
    return %arg0, %c0_i32 : i32, i32
  }
}

</mosaic_0001>

<llo_original>
// kernel: fwd.1
$region0: #{fwd.1}
  #allocation0 [shape = 'u32[]', space=smem, size = 0x4, offset = 0x4, fixed_abs, tag = 'smem constant byte address 0x4 - core index']
  #allocation1 [shape = 'u32[144,128]{1,0:T(1,128)}', space=vmem, size = 0x12000, scoped, tag = 'internal scratch']
  %s0 = inlined_call_operand.vmem [shape: f32[32,256], index: 0, kind: input, shape index: {}]
  %s1 = inlined_call_operand.vmem [shape: f32[32,128], index: 1, kind: input, shape index: {}]
  %s2 = inlined_call_operand.vmem [shape: bf16[256,128], index: 2, kind: input, shape index: {}]
  %s3 = inlined_call_operand.vmem [shape: f32[1,128], index: 3, kind: input, shape index: {}]
  %s4 = inlined_call_operand.vmem [shape: bf16[128,128], index: 4, kind: input, shape index: {}]
  %s5 = inlined_call_operand.vmem [shape: f32[1,128], index: 5, kind: input, shape index: {}]
  %s6 = inlined_call_operand.vmem [shape: bf16[128,128], index: 6, kind: input, shape index: {}]
  %s7 = inlined_call_operand.vmem [shape: f32[1,128], index: 7, kind: input, shape index: {}]
  %s8 = inlined_call_operand.vmem [shape: bf16[128,128], index: 8, kind: input, shape index: {}]
  %s9 = inlined_call_operand.vmem [shape: f32[1,128], index: 9, kind: input, shape index: {}]
  %s10 = inlined_call_operand.vmem [shape: bf16[128,128], index: 10, kind: input, shape index: {}]
  %s11 = inlined_call_operand.vmem [shape: f32[1,128], index: 11, kind: input, shape index: {}]
  %s12 = inlined_call_operand.vmem [shape: f32[1,128], index: 12, kind: input, shape index: {}]
  %s13 = inlined_call_operand.vmem [shape: f32[1,128], index: 13, kind: input, shape index: {}]
  %s14 = inlined_call_operand.vmem [shape: f32[32,128], index: 14, kind: output, shape index: {}]
  %s15 = sld [smem:[#allocation0]]
  $region89: #{fwd.1} parent=0
    _
  %s17 = ssub.s32 1, %s15
  %s18 = scalar_select 0, %s17, %s15
  loop: start=0, step=1, limit=4
  $region2: #{fwd.1} parent=0 // loop_pre_header
    _
  $region3: #{fwd.1} parent=0 // loop_header
    %s20 = sphi 0, %s24
    %p21 = scmp.ge.s32.totalorder %s20, 4
    %s30 = sphi 0, %s32
    %s33 = sphi 0, %s30
    %s34 = sphi 0, %s33
    %s50 = sphi 0, %s34
    %s56 = sphi 0, %s58
    %s59 = sphi 0, %s56
    %s60 = sphi 0, %s59
    %s76 = sphi 0, %s60
    %s80 = sphi 0, %s80
    %s82 = sphi 0, %s80
    %s83 = sphi 0, %s82
    %s97 = sphi 0, %s83
    %s101 = sphi 0, %s101
    %s103 = sphi 0, %s101
    %s104 = sphi 0, %s103
    %s118 = sphi 0, %s104
    %s122 = sphi 0, %s122
    %s124 = sphi 0, %s122
    %s125 = sphi 0, %s124
    %s139 = sphi 0, %s125
    %s143 = sphi 0, %s143
    %s145 = sphi 0, %s143
    %s146 = sphi 0, %s145
    %s160 = sphi 0, %s146
    %s164 = sphi 0, %s164
    %s166 = sphi 0, %s164
    %s167 = sphi 0, %s166
    %s181 = sphi 0, %s167
    %s185 = sphi 0, %s185
    %s187 = sphi 0, %s185
    %s188 = sphi 0, %s187
    %s202 = sphi 0, %s188
    %s206 = sphi 0, %s206
    %s208 = sphi 0, %s206
    %s209 = sphi 0, %s208
    %s223 = sphi 0, %s209
    %s227 = sphi 0, %s227
    %s229 = sphi 0, %s227
    %s230 = sphi 0, %s229
    %s244 = sphi 0, %s230
    %s248 = sphi 0, %s248
    %s250 = sphi 0, %s248
    %s251 = sphi 0, %s250
    %s265 = sphi 0, %s251
    %s269 = sphi 0, %s269
    %s271 = sphi 0, %s269
    %s272 = sphi 0, %s271
    %s286 = sphi 0, %s272
    %s290 = sphi 0, %s290
    %s292 = sphi 0, %s290
    %s293 = sphi 0, %s292
    %s307 = sphi 0, %s293
    %s311 = sphi 0, %s311
    %s313 = sphi 0, %s311
    %s314 = sphi 0, %s313
    %s328 = sphi 0, %s314
    %s334 = sphi 0, %s336
    %s337 = sphi 0, %s334
    %s338 = sphi 0, %s337
    %s354 = sphi 0, %s338
  $region4: #{fwd.1} parent=0 // loop_header_branch
    %23 = sbr.rel (%p21) target = $region8
  $region5: #{fwd.1} parent=0 // loop_body
    %s25 = ssub.s32 %s20, 1
    %s26 = ssub.s32 %s20, 2
    %s27 = sadd.s32 %s20, 1
    %s28 = ssub.s32 %s20, %s27
    %p29 = scmp.eq.s32.totalorder %s28, 0
    %s31 = sadd.s32 %s30, 1
    %s32 = scalar_select %p29, %s30, %s31
    %p35 = pneg %p29
    %p36 = scmp.eq.s32.totalorder %s20, 1
    %p37 = por %p35, %p36
    %p38 = scmp.ne.s32.totalorder %s30, %s33
    %p39 = scmp.eq.s32.totalorder %s20, 0
    %p40 = por %p38, %p39
    %p41 = scmp.ne.s32.totalorder %s30, %s33
    %p42 = scmp.eq.s32.totalorder %s25, 1
    %p43 = por %p41, %p42
    %p44 = scmp.ne.s32.totalorder %s33, %s34
    %p45 = scmp.eq.s32.totalorder %s25, 0
    %p46 = por %p44, %p45
    %p47 = scmp.ne.s32.totalorder %s33, %s34
    %p48 = scmp.eq.s32.totalorder %s26, 1
    %p49 = por %p47, %p48
    %p51 = scmp.ne.s32.totalorder %s34, %s50
    %p52 = scmp.eq.s32.totalorder %s26, 0
    %p53 = por %p51, %p52
    %s54 = ssub.s32 %s20, %s27
    %p55 = scmp.eq.s32.totalorder %s54, 0
    %s57 = sadd.s32 %s56, 1
    %s58 = scalar_select %p55, %s56, %s57
    %p61 = pneg %p55
    %p62 = scmp.eq.s32.totalorder %s20, 1
    %p63 = por %p61, %p62
    %p64 = scmp.ne.s32.totalorder %s56, %s59
    %p65 = scmp.eq.s32.totalorder %s20, 0
    %p66 = por %p64, %p65
    %p67 = scmp.ne.s32.totalorder %s56, %s59
    %p68 = scmp.eq.s32.totalorder %s25, 1
    %p69 = por %p67, %p68
    %p70 = scmp.ne.s32.totalorder %s59, %s60
    %p71 = scmp.eq.s32.totalorder %s25, 0
    %p72 = por %p70, %p71
    %p73 = scmp.ne.s32.totalorder %s59, %s60
    %p74 = scmp.eq.s32.totalorder %s26, 1
    %p75 = por %p73, %p74
    %p77 = scmp.ne.s32.totalorder %s60, %s76
    %p78 = scmp.eq.s32.totalorder %s26, 0
    %p79 = por %p77, %p78
    %s81 = sadd.s32 %s80, 1
    %p84 = scmp.eq.s32.totalorder %s20, 1
    %p85 = scmp.ne.s32.totalorder %s80, %s82
    %p86 = scmp.eq.s32.totalorder %s20, 0
    %p87 = por %p85, %p86
    %p88 = scmp.ne.s32.totalorder %s80, %s82
    %p89 = scmp.eq.s32.totalorder %s25, 1
    %p90 = por %p88, %p89
    %p91 = scmp.ne.s32.totalorder %s82, %s83
    %p92 = scmp.eq.s32.totalorder %s25, 0
    %p93 = por %p91, %p92
    %p94 = scmp.ne.s32.totalorder %s82, %s83
    %p95 = scmp.eq.s32.totalorder %s26, 1
    %p96 = por %p94, %p95
    %p98 = scmp.ne.s32.totalorder %s83, %s97
    %p99 = scmp.eq.s32.totalorder %s26, 0
    %p100 = por %p98, %p99
    %s102 = sadd.s32 %s101, 1
    %p105 = scmp.eq.s32.totalorder %s20, 1
    %p106 = scmp.ne.s32.totalorder %s101, %s103
    %p107 = scmp.eq.s32.totalorder %s20, 0
    %p108 = por %p106, %p107
    %p109 = scmp.ne.s32.totalorder %s101, %s103
    %p110 = scmp.eq.s32.totalorder %s25, 1
    %p111 = por %p109, %p110
    %p112 = scmp.ne.s32.totalorder %s103, %s104
    %p113 = scmp.eq.s32.totalorder %s25, 0
    %p114 = por %p112, %p113
    %p115 = scmp.ne.s32.totalorder %s103, %s104
    %p116 = scmp.eq.s32.totalorder %s26, 1
    %p117 = por %p115, %p116
    %p119 = scmp.ne.s32.totalorder %s104, %s118
    %p120 = scmp.eq.s32.totalorder %s26, 0
    %p121 = por %p119, %p120
    %s123 = sadd.s32 %s122, 1
    %p126 = scmp.eq.s32.totalorder %s20, 1
    %p127 = scmp.ne.s32.totalorder %s122, %s124
    %p128 = scmp.eq.s32.totalorder %s20, 0
    %p129 = por %p127, %p128
    %p130 = scmp.ne.s32.totalorder %s122, %s124
    %p131 = scmp.eq.s32.totalorder %s25, 1
    %p132 = por %p130, %p131
    %p133 = scmp.ne.s32.totalorder %s124, %s125
    %p134 = scmp.eq.s32.totalorder %s25, 0
    %p135 = por %p133, %p134
    %p136 = scmp.ne.s32.totalorder %s124, %s125
    %p137 = scmp.eq.s32.totalorder %s26, 1
    %p138 = por %p136, %p137
    %p140 = scmp.ne.s32.totalorder %s125, %s139
    %p141 = scmp.eq.s32.totalorder %s26, 0
    %p142 = por %p140, %p141
    %s144 = sadd.s32 %s143, 1
    %p147 = scmp.eq.s32.totalorder %s20, 1
    %p148 = scmp.ne.s32.totalorder %s143, %s145
    %p149 = scmp.eq.s32.totalorder %s20, 0
    %p150 = por %p148, %p149
    %p151 = scmp.ne.s32.totalorder %s143, %s145
    %p152 = scmp.eq.s32.totalorder %s25, 1
    %p153 = por %p151, %p152
    %p154 = scmp.ne.s32.totalorder %s145, %s146
    %p155 = scmp.eq.s32.totalorder %s25, 0
    %p156 = por %p154, %p155
    %p157 = scmp.ne.s32.totalorder %s145, %s146
    %p158 = scmp.eq.s32.totalorder %s26, 1
    %p159 = por %p157, %p158
    %p161 = scmp.ne.s32.totalorder %s146, %s160
    %p162 = scmp.eq.s32.totalorder %s26, 0
    %p163 = por %p161, %p162
    %s165 = sadd.s32 %s164, 1
    %p168 = scmp.eq.s32.totalorder %s20, 1
    %p169 = scmp.ne.s32.totalorder %s164, %s166
    %p170 = scmp.eq.s32.totalorder %s20, 0
    %p171 = por %p169, %p170
    %p172 = scmp.ne.s32.totalorder %s164, %s166
    %p173 = scmp.eq.s32.totalorder %s25, 1
    %p174 = por %p172, %p173
    %p175 = scmp.ne.s32.totalorder %s166, %s167
    %p176 = scmp.eq.s32.totalorder %s25, 0
    %p177 = por %p175, %p176
    %p178 = scmp.ne.s32.totalorder %s166, %s167
    %p179 = scmp.eq.s32.totalorder %s26, 1
    %p180 = por %p178, %p179
    %p182 = scmp.ne.s32.totalorder %s167, %s181
    %p183 = scmp.eq.s32.totalorder %s26, 0
    %p184 = por %p182, %p183
    %s186 = sadd.s32 %s185, 1
    %p189 = scmp.eq.s32.totalorder %s20, 1
    %p190 = scmp.ne.s32.totalorder %s185, %s187
    %p191 = scmp.eq.s32.totalorder %s20, 0
    %p192 = por %p190, %p191
    %p193 = scmp.ne.s32.totalorder %s185, %s187
    %p194 = scmp.eq.s32.totalorder %s25, 1
    %p195 = por %p193, %p194
    %p196 = scmp.ne.s32.totalorder %s187, %s188
    %p197 = scmp.eq.s32.totalorder %s25, 0
    %p198 = por %p196, %p197
    %p199 = scmp.ne.s32.totalorder %s187, %s188
    %p200 = scmp.eq.s32.totalorder %s26, 1
    %p201 = por %p199, %p200
    %p203 = scmp.ne.s32.totalorder %s188, %s202
    %p204 = scmp.eq.s32.totalorder %s26, 0
    %p205 = por %p203, %p204
    %s207 = sadd.s32 %s206, 1
    %p210 = scmp.eq.s32.totalorder %s20, 1
    %p211 = scmp.ne.s32.totalorder %s206, %s208
    %p212 = scmp.eq.s32.totalorder %s20, 0
    %p213 = por %p211, %p212
    %p214 = scmp.ne.s32.totalorder %s206, %s208
    %p215 = scmp.eq.s32.totalorder %s25, 1
    %p216 = por %p214, %p215
    %p217 = scmp.ne.s32.totalorder %s208, %s209
    %p218 = scmp.eq.s32.totalorder %s25, 0
    %p219 = por %p217, %p218
    %p220 = scmp.ne.s32.totalorder %s208, %s209
    %p221 = scmp.eq.s32.totalorder %s26, 1
    %p222 = por %p220, %p221
    %p224 = scmp.ne.s32.totalorder %s209, %s223
    %p225 = scmp.eq.s32.totalorder %s26, 0
    %p226 = por %p224, %p225
    %s228 = sadd.s32 %s227, 1
    %p231 = scmp.eq.s32.totalorder %s20, 1
    %p232 = scmp.ne.s32.totalorder %s227, %s229
    %p233 = scmp.eq.s32.totalorder %s20, 0
    %p234 = por %p232, %p233
    %p235 = scmp.ne.s32.totalorder %s227, %s229
    %p236 = scmp.eq.s32.totalorder %s25, 1
    %p237 = por %p235, %p236
    %p238 = scmp.ne.s32.totalorder %s229, %s230
    %p239 = scmp.eq.s32.totalorder %s25, 0
    %p240 = por %p238, %p239
    %p241 = scmp.ne.s32.totalorder %s229, %s230
    %p242 = scmp.eq.s32.totalorder %s26, 1
    %p243 = por %p241, %p242
    %p245 = scmp.ne.s32.totalorder %s230, %s244
    %p246 = scmp.eq.s32.totalorder %s26, 0
    %p247 = por %p245, %p246
    %s249 = sadd.s32 %s248, 1
    %p252 = scmp.eq.s32.totalorder %s20, 1
    %p253 = scmp.ne.s32.totalorder %s248, %s250
    %p254 = scmp.eq.s32.totalorder %s20, 0
    %p255 = por %p253, %p254
    %p256 = scmp.ne.s32.totalorder %s248, %s250
    %p257 = scmp.eq.s32.totalorder %s25, 1
    %p258 = por %p256, %p257
    %p259 = scmp.ne.s32.totalorder %s250, %s251
    %p260 = scmp.eq.s32.totalorder %s25, 0
    %p261 = por %p259, %p260
    %p262 = scmp.ne.s32.totalorder %s250, %s251
    %p263 = scmp.eq.s32.totalorder %s26, 1
    %p264 = por %p262, %p263
    %p266 = scmp.ne.s32.totalorder %s251, %s265
    %p267 = scmp.eq.s32.totalorder %s26, 0
    %p268 = por %p266, %p267
    %s270 = sadd.s32 %s269, 1
    %p273 = scmp.eq.s32.totalorder %s20, 1
    %p274 = scmp.ne.s32.totalorder %s269, %s271
    %p275 = scmp.eq.s32.totalorder %s20, 0
    %p276 = por %p274, %p275
    %p277 = scmp.ne.s32.totalorder %s269, %s271
    %p278 = scmp.eq.s32.totalorder %s25, 1
    %p279 = por %p277, %p278
    %p280 = scmp.ne.s32.totalorder %s271, %s272
    %p281 = scmp.eq.s32.totalorder %s25, 0
    %p282 = por %p280, %p281
    %p283 = scmp.ne.s32.totalorder %s271, %s272
    %p284 = scmp.eq.s32.totalorder %s26, 1
    %p285 = por %p283, %p284
    %p287 = scmp.ne.s32.totalorder %s272, %s286
    %p288 = scmp.eq.s32.totalorder %s26, 0
    %p289 = por %p287, %p288
    %s291 = sadd.s32 %s290, 1
    %p294 = scmp.eq.s32.totalorder %s20, 1
    %p295 = scmp.ne.s32.totalorder %s290, %s292
    %p296 = scmp.eq.s32.totalorder %s20, 0
    %p297 = por %p295, %p296
    %p298 = scmp.ne.s32.totalorder %s290, %s292
    %p299 = scmp.eq.s32.totalorder %s25, 1
    %p300 = por %p298, %p299
    %p301 = scmp.ne.s32.totalorder %s292, %s293
    %p302 = scmp.eq.s32.totalorder %s25, 0
    %p303 = por %p301, %p302
    %p304 = scmp.ne.s32.totalorder %s292, %s293
    %p305 = scmp.eq.s32.totalorder %s26, 1
    %p306 = por %p304, %p305
    %p308 = scmp.ne.s32.totalorder %s293, %s307
    %p309 = scmp.eq.s32.totalorder %s26, 0
    %p310 = por %p308, %p309
    %s312 = sadd.s32 %s311, 1
    %p315 = scmp.eq.s32.totalorder %s20, 1
    %p316 = scmp.ne.s32.totalorder %s311, %s313
    %p317 = scmp.eq.s32.totalorder %s20, 0
    %p318 = por %p316, %p317
    %p319 = scmp.ne.s32.totalorder %s311, %s313
    %p320 = scmp.eq.s32.totalorder %s25, 1
    %p321 = por %p319, %p320
    %p322 = scmp.ne.s32.totalorder %s313, %s314
    %p323 = scmp.eq.s32.totalorder %s25, 0
    %p324 = por %p322, %p323
    %p325 = scmp.ne.s32.totalorder %s313, %s314
    %p326 = scmp.eq.s32.totalorder %s26, 1
    %p327 = por %p325, %p326
    %p329 = scmp.ne.s32.totalorder %s314, %s328
    %p330 = scmp.eq.s32.totalorder %s26, 0
    %p331 = por %p329, %p330
    %s332 = ssub.s32 %s20, %s27
    %p333 = scmp.eq.s32.totalorder %s332, 0
    %s335 = sadd.s32 %s334, 1
    %s336 = scalar_select %p333, %s334, %s335
    %p339 = pneg %p333
    %p340 = scmp.eq.s32.totalorder %s20, 1
    %p341 = por %p339, %p340
    %p342 = scmp.ne.s32.totalorder %s334, %s337
    %p343 = scmp.eq.s32.totalorder %s20, 0
    %p344 = por %p342, %p343
    %p345 = scmp.ne.s32.totalorder %s334, %s337
    %p346 = scmp.eq.s32.totalorder %s25, 1
    %p347 = por %p345, %p346
    %p348 = scmp.ne.s32.totalorder %s337, %s338
    %p349 = scmp.eq.s32.totalorder %s25, 0
    %p350 = por %p348, %p349
    %p351 = scmp.ne.s32.totalorder %s337, %s338
    %p352 = scmp.eq.s32.totalorder %s26, 1
    %p353 = por %p351, %p352
    %p355 = scmp.ne.s32.totalorder %s338, %s354
    %p356 = scmp.eq.s32.totalorder %s26, 0
    %p357 = por %p355, %p356
    %p358 = scmp.le.s32.totalorder 1, %s20
    %p359 = scmp.lt.s32.totalorder %s20, 3
    %p360 = pnand %p358, %p359
    %p361 = pneg %p360
    // Predicated region
    $region9: #{fwd.1} parent=5 // pred_check
      _
    $region10: #{fwd.1} parent=5 // pred_check_branch
      %363 = sbr.rel (%p360) target = $region12
    $region11: #{fwd.1} parent=5 // pred_region
      %s364 = ssub.s32 %s20, 1
      // Predicated region
      $region13: #{fwd.1} parent=11 // pred_check
        %p365 = pneg %p93
      $region14: #{fwd.1} parent=11 // pred_check_branch
        %367 = sbr.rel (%p365) target = $region16
      $region15: #{fwd.1} parent=11 // pred_region
        _
      $region16: #{fwd.1} parent=11 // pred_fallthru
        _
      // Predicated region
      $region17: #{fwd.1} parent=11 // pred_check
        %p368 = pneg %p114
      $region18: #{fwd.1} parent=11 // pred_check_branch
        %370 = sbr.rel (%p368) target = $region20
      $region19: #{fwd.1} parent=11 // pred_region
        _
      $region20: #{fwd.1} parent=11 // pred_fallthru
        _
      // Predicated region
      $region21: #{fwd.1} parent=11 // pred_check
        %p371 = pneg %p135
      $region22: #{fwd.1} parent=11 // pred_check_branch
        %373 = sbr.rel (%p371) target = $region24
      $region23: #{fwd.1} parent=11 // pred_region
        _
      $region24: #{fwd.1} parent=11 // pred_fallthru
        _
      // Predicated region
      $region25: #{fwd.1} parent=11 // pred_check
        %p374 = pneg %p156
      $region26: #{fwd.1} parent=11 // pred_check_branch
        %376 = sbr.rel (%p374) target = $region28
      $region27: #{fwd.1} parent=11 // pred_region
        _
      $region28: #{fwd.1} parent=11 // pred_fallthru
        _
      // Predicated region
      $region29: #{fwd.1} parent=11 // pred_check
        %p377 = pneg %p177
      $region30: #{fwd.1} parent=11 // pred_check_branch
        %379 = sbr.rel (%p377) target = $region32
      $region31: #{fwd.1} parent=11 // pred_region
        _
      $region32: #{fwd.1} parent=11 // pred_fallthru
        _
      // Predicated region
      $region33: #{fwd.1} parent=11 // pred_check
        %p380 = pneg %p198
      $region34: #{fwd.1} parent=11 // pred_check_branch
        %382 = sbr.rel (%p380) target = $region36
      $region35: #{fwd.1} parent=11 // pred_region
        _
      $region36: #{fwd.1} parent=11 // pred_fallthru
        _
      // Predicated region
      $region37: #{fwd.1} parent=11 // pred_check
        %p383 = pneg %p219
      $region38: #{fwd.1} parent=11 // pred_check_branch
        %385 = sbr.rel (%p383) target = $region40
      $region39: #{fwd.1} parent=11 // pred_region
        _
      $region40: #{fwd.1} parent=11 // pred_fallthru
        _
      // Predicated region
      $region41: #{fwd.1} parent=11 // pred_check
        %p386 = pneg %p240
      $region42: #{fwd.1} parent=11 // pred_check_branch
        %388 = sbr.rel (%p386) target = $region44
      $region43: #{fwd.1} parent=11 // pred_region
        _
      $region44: #{fwd.1} parent=11 // pred_fallthru
        _
      // Predicated region
      $region45: #{fwd.1} parent=11 // pred_check
        %p389 = pneg %p261
      $region46: #{fwd.1} parent=11 // pred_check_branch
        %391 = sbr.rel (%p389) target = $region48
      $region47: #{fwd.1} parent=11 // pred_region
        _
      $region48: #{fwd.1} parent=11 // pred_fallthru
        _
      // Predicated region
      $region49: #{fwd.1} parent=11 // pred_check
        %p392 = pneg %p282
      $region50: #{fwd.1} parent=11 // pred_check_branch
        %394 = sbr.rel (%p392) target = $region52
      $region51: #{fwd.1} parent=11 // pred_region
        _
      $region52: #{fwd.1} parent=11 // pred_fallthru
        _
      // Predicated region
      $region53: #{fwd.1} parent=11 // pred_check
        %p395 = pneg %p303
      $region54: #{fwd.1} parent=11 // pred_check_branch
        %397 = sbr.rel (%p395) target = $region56
      $region55: #{fwd.1} parent=11 // pred_region
        _
      $region56: #{fwd.1} parent=11 // pred_fallthru
        _
      // Predicated region
      $region57: #{fwd.1} parent=11 // pred_check
        %p398 = pneg %p324
      $region58: #{fwd.1} parent=11 // pred_check_branch
        %400 = sbr.rel (%p398) target = $region60
      $region59: #{fwd.1} parent=11 // pred_region
        _
      $region60: #{fwd.1} parent=11 // pred_fallthru
        _
    $region12: #{fwd.1} parent=5 // pred_fallthru
      _
    %p401 = scmp.lt.s32.totalorder %s20, 2
    // Predicated region
    $region61: #{fwd.1} parent=5 // pred_check
      %p402 = pneg %p401
    $region62: #{fwd.1} parent=5 // pred_check_branch
      %404 = sbr.rel (%p402) target = $region64
    $region63: #{fwd.1} parent=5 // pred_region
      // Predicated region
      $region65: #{fwd.1} parent=63 // pred_check
        %p405 = pneg %p40
      $region66: #{fwd.1} parent=63 // pred_check_branch
        %407 = sbr.rel (%p405) target = $region68
      $region67: #{fwd.1} parent=63 // pred_region
        %s408 = smul.u32 2, %s20
        %p409 = scmp.lt.s32.totalorder %s408, 3
        %s410 = scalar_select %p409, %s408, 3
        %s411 = smul.addr %s410, 2
        %s412 = smul.addr %s411, 8
        %s413 = scalar_lea.vmem %s0, %s412
        %s414 = smul.u32 2, %s20
      $region68: #{fwd.1} parent=63 // pred_fallthru
        _
      // Predicated region
      $region69: #{fwd.1} parent=63 // pred_check
        %p415 = pneg %p66
      $region70: #{fwd.1} parent=63 // pred_check_branch
        %417 = sbr.rel (%p415) target = $region72
      $region71: #{fwd.1} parent=63 // pred_region
        %s418 = smul.u32 2, %s20
        %p419 = scmp.lt.s32.totalorder %s418, 3
        %s420 = scalar_select %p419, %s418, 3
        %s421 = smul.addr %s420, 8
        %s422 = scalar_lea.vmem %s1, %s421
        %s423 = smul.u32 2, %s20
      $region72: #{fwd.1} parent=63 // pred_fallthru
        _
    $region64: #{fwd.1} parent=5 // pred_fallthru
      _
    %p424 = scmp.le.s32.totalorder 1, %s20
    %p425 = scmp.lt.s32.totalorder %s20, 3
    %p426 = pnand %p424, %p425
    %p427 = pneg %p426
    // Predicated region
    $region73: #{fwd.1} parent=5 // pred_check
      _
    $region74: #{fwd.1} parent=5 // pred_check_branch
      %429 = sbr.rel (%p426) target = $region76
    $region75: #{fwd.1} parent=5 // pred_region
      %s430 = ssub.s32 %s20, 1
      %s431 = smul.u32 2, %s25
      %p432 = scmp.lt.s32.totalorder %s431, 3
      %s433 = scalar_select %p432, %s431, 3
      %s434 = smul.addr %s433, 2
      %s435 = smul.addr %s434, 8
      %s436 = scalar_lea.vmem %s0, %s435
      %p437 = pneg %p46
      %p438 = pneg %p43
      %s439 = smul.u32 2, %s25
      %p440 = scmp.lt.s32.totalorder %s439, 3
      %s441 = scalar_select %p440, %s439, 3
      %s442 = smul.addr %s441, 8
      %s443 = scalar_lea.vmem %s1, %s442
      %p444 = pneg %p72
      %p445 = pneg %p69
      %p446 = pneg %p93
      %p447 = pneg %p90
      %p448 = pneg %p114
      %p449 = pneg %p111
      %p450 = pneg %p135
      %p451 = pneg %p132
      %p452 = pneg %p156
      %p453 = pneg %p153
      %p454 = pneg %p177
      %p455 = pneg %p174
      %p456 = pneg %p198
      %p457 = pneg %p195
      %p458 = pneg %p219
      %p459 = pneg %p216
      %p460 = pneg %p240
      %p461 = pneg %p237
      %p462 = pneg %p261
      %p463 = pneg %p258
      %p464 = pneg %p282
      %p465 = pneg %p279
      %p466 = pneg %p303
      %p467 = pneg %p300
      %p468 = pneg %p324
      %p469 = pneg %p321
      %p470 = pneg %p350
      %p471 = pneg %p347
      %s472 = smul.u32 2, %s25
      %p473 = scmp.lt.s32.totalorder %s472, 3
      %s474 = scalar_select %p473, %s472, 3
      %s475 = smul.addr %s474, 8
      %s476 = scalar_lea.vmem %s14, %s475
      %s477 = smul.u32 2, %s25
      %p478 = scmp.lt.s32.totalorder %s477, 3
      %s479 = scalar_select %p478, %s477, 3
      %s480 = smul.addr %s479, 2
      %s481 = smul.addr %s480, 8
      %s482 = scalar_lea.vmem %s0, %s481
      %s483 = smul.u32 2, %s25
      %s484 = smul.u32 2, %s25
      %p485 = scmp.lt.s32.totalorder %s484, 3
      %s486 = scalar_select %p485, %s484, 3
      %s487 = smul.addr %s486, 8
      %s488 = scalar_lea.vmem %s1, %s487
      %s489 = smul.u32 2, %s25
      %s490 = smul.u32 2, %s25
      %p491 = scmp.lt.s32.totalorder %s490, 3
      %s492 = scalar_select %p491, %s490, 3
      %s493 = smul.addr %s492, 8
      %s494 = scalar_lea.vmem %s14, %s493
      %s495 = smul.u32 2, %s25
      %v497 = vld [vmem:[%s482] sm:$0xff]
      %v498 = vld [vmem:[%s482 + $0x8] sm:$0xff]
      %v499 = vld [vmem:[%s482 + $0x10] sm:$0xff]
      %v500 = vld [vmem:[%s482 + $0x18] sm:$0xff]
      %v501 = vpack.c.bf16 %v499, %v497
      %v502 = vpack.c.bf16 %v500, %v498
      %v503 = vld [vmem:[%s2] sm:$0xf]
      %v504 = vld [vmem:[%s2 + $0x4] sm:$0xf]
      %v505 = vld [vmem:[%s2 + $0x8] sm:$0xf]
      %v506 = vld [vmem:[%s2 + $0xc] sm:$0xf]
      %v507 = vld [vmem:[%s2 + $0x10] sm:$0xf]
      %v508 = vld [vmem:[%s2 + $0x14] sm:$0xf]
      %v509 = vld [vmem:[%s2 + $0x18] sm:$0xf]
      %v510 = vld [vmem:[%s2 + $0x1c] sm:$0xf]
      %v511 = vld [vmem:[%s2 + $0x20] sm:$0xf]
      %v512 = vld [vmem:[%s2 + $0x24] sm:$0xf]
      %v513 = vld [vmem:[%s2 + $0x28] sm:$0xf]
      %v514 = vld [vmem:[%s2 + $0x2c] sm:$0xf]
      %v515 = vld [vmem:[%s2 + $0x30] sm:$0xf]
      %v516 = vld [vmem:[%s2 + $0x34] sm:$0xf]
      %v517 = vld [vmem:[%s2 + $0x38] sm:$0xf]
      %v518 = vld [vmem:[%s2 + $0x3c] sm:$0xf]
      %v519 = vld [vmem:[%s2 + $0x40] sm:$0xf]
      %v520 = vld [vmem:[%s2 + $0x44] sm:$0xf]
      %v521 = vld [vmem:[%s2 + $0x48] sm:$0xf]
      %v522 = vld [vmem:[%s2 + $0x4c] sm:$0xf]
      %v523 = vld [vmem:[%s2 + $0x50] sm:$0xf]
      %v524 = vld [vmem:[%s2 + $0x54] sm:$0xf]
      %v525 = vld [vmem:[%s2 + $0x58] sm:$0xf]
      %v526 = vld [vmem:[%s2 + $0x5c] sm:$0xf]
      %v527 = vld [vmem:[%s2 + $0x60] sm:$0xf]
      %v528 = vld [vmem:[%s2 + $0x64] sm:$0xf]
      %v529 = vld [vmem:[%s2 + $0x68] sm:$0xf]
      %v530 = vld [vmem:[%s2 + $0x6c] sm:$0xf]
      %v531 = vld [vmem:[%s2 + $0x70] sm:$0xf]
      %v532 = vld [vmem:[%s2 + $0x74] sm:$0xf]
      %v533 = vld [vmem:[%s2 + $0x78] sm:$0xf]
      %v534 = vld [vmem:[%s2 + $0x7c] sm:$0xf]
      %v535 = vld [vmem:[%s3] sm:$0x1]
      %v537 = vlaneseq
      %v538 = vshrl.u32 %v537, 7
      %v539 = vsub.s32 0, %v538
      %v540 = vrot.slane %v535, %v539
      %v574 = vunpack.c.l.b16 %v503
      %v575 = vunpack.c.l.b16 %v504
      %v576 = vunpack.c.l.b16 %v505
      %v577 = vunpack.c.l.b16 %v506
      %v578 = vunpack.c.l.b16 %v507
      %v579 = vunpack.c.l.b16 %v508
      %v580 = vunpack.c.l.b16 %v509
      %v581 = vunpack.c.l.b16 %v510
      %v582 = vunpack.c.l.b16 %v511
      %v583 = vunpack.c.l.b16 %v512
      %v584 = vunpack.c.l.b16 %v513
      %v585 = vunpack.c.l.b16 %v514
      %v586 = vunpack.c.l.b16 %v515
      %v587 = vunpack.c.l.b16 %v516
      %v588 = vunpack.c.l.b16 %v517
      %v589 = vunpack.c.l.b16 %v518
      %v590 = vunpack.c.l.b16 %v519
      %v591 = vunpack.c.l.b16 %v520
      %v592 = vunpack.c.l.b16 %v521
      %v593 = vunpack.c.l.b16 %v522
      %v594 = vunpack.c.l.b16 %v523
      %v595 = vunpack.c.l.b16 %v524
      %v596 = vunpack.c.l.b16 %v525
      %v597 = vunpack.c.l.b16 %v526
      %v598 = vunpack.c.l.b16 %v527
      %v599 = vunpack.c.l.b16 %v528
      %v600 = vunpack.c.l.b16 %v529
      %v601 = vunpack.c.l.b16 %v530
      %v602 = vunpack.c.l.b16 %v531
      %v603 = vunpack.c.l.b16 %v532
      %v604 = vunpack.c.l.b16 %v533
      %v605 = vunpack.c.l.b16 %v534
      %v606 = vpack.c.b16 %v575, %v574
      %v607 = vpack.c.b16 %v577, %v576
      %v608 = vpack.c.b16 %v579, %v578
      %v609 = vpack.c.b16 %v581, %v580
      %v610 = vpack.c.b16 %v583, %v582
      %v611 = vpack.c.b16 %v585, %v584
      %v612 = vpack.c.b16 %v587, %v586
      %v613 = vpack.c.b16 %v589, %v588
      %v614 = vpack.c.b16 %v591, %v590
      %v615 = vpack.c.b16 %v593, %v592
      %v616 = vpack.c.b16 %v595, %v594
      %v617 = vpack.c.b16 %v597, %v596
      %v618 = vpack.c.b16 %v599, %v598
      %v619 = vpack.c.b16 %v601, %v600
      %v620 = vpack.c.b16 %v603, %v602
      %v621 = vpack.c.b16 %v605, %v604
      %638 = vmatprep.subr.bf16.mxu0 0
      %639 = vmatpush1.bf16.msra.mxu0 %v606
      %640 = vmatprep.subr.bf16.mxu0 0
      %641 = vmatpush1.bf16.msra.mxu0 %v607
      %642 = vmatprep.subr.bf16.mxu0 0
      %643 = vmatpush1.bf16.msra.mxu0 %v608
      %644 = vmatprep.subr.bf16.mxu0 0
      %645 = vmatpush1.bf16.msra.mxu0 %v609
      %646 = vmatprep.subr.bf16.mxu0 0
      %647 = vmatpush1.bf16.msra.mxu0 %v610
      %648 = vmatprep.subr.bf16.mxu0 0
      %649 = vmatpush1.bf16.msra.mxu0 %v611
      %650 = vmatprep.subr.bf16.mxu0 0
      %651 = vmatpush1.bf16.msra.mxu0 %v612
      %652 = vmatprep.subr.bf16.mxu0 0
      %653 = vmatpush1.bf16.msra.mxu0 %v613
      %654 = vmatprep.subr.bf16.mxu0 0
      %655 = vmatpush1.bf16.msra.mxu0 %v614
      %656 = vmatprep.subr.bf16.mxu0 0
      %657 = vmatpush1.bf16.msra.mxu0 %v615
      %658 = vmatprep.subr.bf16.mxu0 0
      %659 = vmatpush1.bf16.msra.mxu0 %v616
      %660 = vmatprep.subr.bf16.mxu0 0
      %661 = vmatpush1.bf16.msra.mxu0 %v617
      %662 = vmatprep.subr.bf16.mxu0 0
      %663 = vmatpush1.bf16.msra.mxu0 %v618
      %664 = vmatprep.subr.bf16.mxu0 0
      %665 = vmatpush1.bf16.msra.mxu0 %v619
      %666 = vmatprep.subr.bf16.mxu0 0
      %667 = vmatpush1.bf16.msra.mxu0 %v620
      %668 = vmatprep.subr.bf16.mxu0 0
      %669 = vmatpush1.bf16.msra.mxu0 %v621
      %670 = vmatprep.mubr.bf16.mxu0 %v502
      %671 = vmatmul.mubr.bf16.gmra.mrb[0].mxu0 %v501
      %v672 = vpop.f32.mrb[0].mxu0
      %v673 = vadd.f32 %v540, %v672
      %v674 = vpop.f32.mrb[0].mxu0
      %v675 = vpop.f32.mrb[0].mxu0
      %v676 = vadd.f32 %v540, %v675
      %v677 = vpop.f32.mrb[0].mxu0
      %678 = vdwg.mxu0
      %v679 = vmax.f32 %v673, 0.0
      %v680 = vmax.f32 %v676, 0.0
      %v681 = vpack.c.bf16 %v680, %v679
      %v682 = vld [vmem:[%s4] sm:$0xf]
      %v683 = vld [vmem:[%s4 + $0x4] sm:$0xf]
      %v684 = vld [vmem:[%s4 + $0x8] sm:$0xf]
      %v685 = vld [vmem:[%s4 + $0xc] sm:$0xf]
      %v686 = vld [vmem:[%s4 + $0x10] sm:$0xf]
      %v687 = vld [vmem:[%s4 + $0x14] sm:$0xf]
      %v688 = vld [vmem:[%s4 + $0x18] sm:$0xf]
      %v689 = vld [vmem:[%s4 + $0x1c] sm:$0xf]
      %v690 = vld [vmem:[%s4 + $0x20] sm:$0xf]
      %v691 = vld [vmem:[%s4 + $0x24] sm:$0xf]
      %v692 = vld [vmem:[%s4 + $0x28] sm:$0xf]
      %v693 = vld [vmem:[%s4 + $0x2c] sm:$0xf]
      %v694 = vld [vmem:[%s4 + $0x30] sm:$0xf]
      %v695 = vld [vmem:[%s4 + $0x34] sm:$0xf]
      %v696 = vld [vmem:[%s4 + $0x38] sm:$0xf]
      %v697 = vld [vmem:[%s4 + $0x3c] sm:$0xf]
      %v698 = vld [vmem:[%s5] sm:$0x1]
      %v700 = vlaneseq
      %v701 = vshrl.u32 %v700, 7
      %v702 = vsub.s32 0, %v701
      %v703 = vrot.slane %v698, %v702
      %v721 = vunpack.c.l.b16 %v682
      %v722 = vunpack.c.l.b16 %v683
      %v723 = vunpack.c.l.b16 %v684
      %v724 = vunpack.c.l.b16 %v685
      %v725 = vunpack.c.l.b16 %v686
      %v726 = vunpack.c.l.b16 %v687
      %v727 = vunpack.c.l.b16 %v688
      %v728 = vunpack.c.l.b16 %v689
      %v729 = vunpack.c.l.b16 %v690
      %v730 = vunpack.c.l.b16 %v691
      %v731 = vunpack.c.l.b16 %v692
      %v732 = vunpack.c.l.b16 %v693
      %v733 = vunpack.c.l.b16 %v694
      %v734 = vunpack.c.l.b16 %v695
      %v735 = vunpack.c.l.b16 %v696
      %v736 = vunpack.c.l.b16 %v697
      %v737 = vpack.c.b16 %v722, %v721
      %v738 = vpack.c.b16 %v724, %v723
      %v739 = vpack.c.b16 %v726, %v725
      %v740 = vpack.c.b16 %v728, %v727
      %v741 = vpack.c.b16 %v730, %v729
      %v742 = vpack.c.b16 %v732, %v731
      %v743 = vpack.c.b16 %v734, %v733
      %v744 = vpack.c.b16 %v736, %v735
      %753 = vmatprep.subr.bf16.mxu0 0
      %754 = vmatpush1.bf16.msra.mxu0 %v737
      %755 = vmatprep.subr.bf16.mxu0 0
      %756 = vmatpush1.bf16.msra.mxu0 %v738
      %757 = vmatprep.subr.bf16.mxu0 0
      %758 = vmatpush1.bf16.msra.mxu0 %v739
      %759 = vmatprep.subr.bf16.mxu0 0
      %760 = vmatpush1.bf16.msra.mxu0 %v740
      %761 = vmatprep.subr.bf16.mxu0 0
      %762 = vmatpush1.bf16.msra.mxu0 %v741
      %763 = vmatprep.subr.bf16.mxu0 0
      %764 = vmatpush1.bf16.msra.mxu0 %v742
      %765 = vmatprep.subr.bf16.mxu0 0
      %766 = vmatpush1.bf16.msra.mxu0 %v743
      %767 = vmatprep.subr.bf16.mxu0 0
      %768 = vmatpush1.bf16.msra.mxu0 %v744
      %769 = vmatprep.subr.bf16.mxu0 0
      %770 = vmatpush1.bf16.msra.mxu0 0
      %771 = vmatprep.subr.bf16.mxu0 0
      %772 = vmatpush1.bf16.msra.mxu0 0
      %773 = vmatprep.subr.bf16.mxu0 0
      %774 = vmatpush1.bf16.msra.mxu0 0
      %775 = vmatprep.subr.bf16.mxu0 0
      %776 = vmatpush1.bf16.msra.mxu0 0
      %777 = vmatprep.subr.bf16.mxu0 0
      %778 = vmatpush1.bf16.msra.mxu0 0
      %779 = vmatprep.subr.bf16.mxu0 0
      %780 = vmatpush1.bf16.msra.mxu0 0
      %781 = vmatprep.subr.bf16.mxu0 0
      %782 = vmatpush1.bf16.msra.mxu0 0
      %783 = vmatprep.subr.bf16.mxu0 0
      %784 = vmatpush1.bf16.msra.mxu0 0
      %785 = vmatprep.mubr.bf16.mxu0 0
      %786 = vmatmul.mubr.bf16.gmra.mrb[0].mxu0 %v681
      %v787 = vpop.f32.mrb[0].mxu0
      %v788 = vadd.f32 %v703, %v787
      %v789 = vpop.f32.mrb[0].mxu0
      %v790 = vpop.f32.mrb[0].mxu0
      %v791 = vadd.f32 %v703, %v790
      %v792 = vpop.f32.mrb[0].mxu0
      %793 = vdwg.mxu0
      %v794 = vmax.f32 %v788, 0.0
      %v795 = vmax.f32 %v791, 0.0
      %v796 = vpack.c.bf16 %v795, %v794
      %v797 = vld [vmem:[%s6] sm:$0xf]
      %v798 = vld [vmem:[%s6 + $0x4] sm:$0xf]
      %v799 = vld [vmem:[%s6 + $0x8] sm:$0xf]
      %v800 = vld [vmem:[%s6 + $0xc] sm:$0xf]
      %v801 = vld [vmem:[%s6 + $0x10] sm:$0xf]
      %v802 = vld [vmem:[%s6 + $0x14] sm:$0xf]
      %v803 = vld [vmem:[%s6 + $0x18] sm:$0xf]
      %v804 = vld [vmem:[%s6 + $0x1c] sm:$0xf]
      %v805 = vld [vmem:[%s6 + $0x20] sm:$0xf]
      %v806 = vld [vmem:[%s6 + $0x24] sm:$0xf]
      %v807 = vld [vmem:[%s6 + $0x28] sm:$0xf]
      %v808 = vld [vmem:[%s6 + $0x2c] sm:$0xf]
      %v809 = vld [vmem:[%s6 + $0x30] sm:$0xf]
      %v810 = vld [vmem:[%s6 + $0x34] sm:$0xf]
      %v811 = vld [vmem:[%s6 + $0x38] sm:$0xf]
      %v812 = vld [vmem:[%s6 + $0x3c] sm:$0xf]
      %v813 = vld [vmem:[%s7] sm:$0x1]
      %v815 = vlaneseq
      %v816 = vshrl.u32 %v815, 7
      %v817 = vsub.s32 0, %v816
      %v818 = vrot.slane %v813, %v817
      %v836 = vunpack.c.l.b16 %v797
      %v837 = vunpack.c.l.b16 %v798
      %v838 = vunpack.c.l.b16 %v799
      %v839 = vunpack.c.l.b16 %v800
      %v840 = vunpack.c.l.b16 %v801
      %v841 = vunpack.c.l.b16 %v802
      %v842 = vunpack.c.l.b16 %v803
      %v843 = vunpack.c.l.b16 %v804
      %v844 = vunpack.c.l.b16 %v805
      %v845 = vunpack.c.l.b16 %v806
      %v846 = vunpack.c.l.b16 %v807
      %v847 = vunpack.c.l.b16 %v808
      %v848 = vunpack.c.l.b16 %v809
      %v849 = vunpack.c.l.b16 %v810
      %v850 = vunpack.c.l.b16 %v811
      %v851 = vunpack.c.l.b16 %v812
      %v852 = vpack.c.b16 %v837, %v836
      %v853 = vpack.c.b16 %v839, %v838
      %v854 = vpack.c.b16 %v841, %v840
      %v855 = vpack.c.b16 %v843, %v842
      %v856 = vpack.c.b16 %v845, %v844
      %v857 = vpack.c.b16 %v847, %v846
      %v858 = vpack.c.b16 %v849, %v848
      %v859 = vpack.c.b16 %v851, %v850
      %868 = vmatprep.subr.bf16.mxu0 0
      %869 = vmatpush1.bf16.msra.mxu0 %v852
      %870 = vmatprep.subr.bf16.mxu0 0
      %871 = vmatpush1.bf16.msra.mxu0 %v853
      %872 = vmatprep.subr.bf16.mxu0 0
      %873 = vmatpush1.bf16.msra.mxu0 %v854
      %874 = vmatprep.subr.bf16.mxu0 0
      %875 = vmatpush1.bf16.msra.mxu0 %v855
      %876 = vmatprep.subr.bf16.mxu0 0
      %877 = vmatpush1.bf16.msra.mxu0 %v856
      %878 = vmatprep.subr.bf16.mxu0 0
      %879 = vmatpush1.bf16.msra.mxu0 %v857
      %880 = vmatprep.subr.bf16.mxu0 0
      %881 = vmatpush1.bf16.msra.mxu0 %v858
      %882 = vmatprep.subr.bf16.mxu0 0
      %883 = vmatpush1.bf16.msra.mxu0 %v859
      %884 = vmatprep.subr.bf16.mxu0 0
      %885 = vmatpush1.bf16.msra.mxu0 0
      %886 = vmatprep.subr.bf16.mxu0 0
      %887 = vmatpush1.bf16.msra.mxu0 0
      %888 = vmatprep.subr.bf16.mxu0 0
      %889 = vmatpush1.bf16.msra.mxu0 0
      %890 = vmatprep.subr.bf16.mxu0 0
      %891 = vmatpush1.bf16.msra.mxu0 0
      %892 = vmatprep.subr.bf16.mxu0 0
      %893 = vmatpush1.bf16.msra.mxu0 0
      %894 = vmatprep.subr.bf16.mxu0 0
      %895 = vmatpush1.bf16.msra.mxu0 0
      %896 = vmatprep.subr.bf16.mxu0 0
      %897 = vmatpush1.bf16.msra.mxu0 0
      %898 = vmatprep.subr.bf16.mxu0 0
      %899 = vmatpush1.bf16.msra.mxu0 0
      %900 = vmatprep.mubr.bf16.mxu0 0
      %901 = vmatmul.mubr.bf16.gmra.mrb[0].mxu0 %v796
      %v902 = vpop.f32.mrb[0].mxu0
      %v903 = vadd.f32 %v818, %v902
      %v904 = vpop.f32.mrb[0].mxu0
      %v905 = vpop.f32.mrb[0].mxu0
      %v906 = vadd.f32 %v818, %v905
      %v907 = vpop.f32.mrb[0].mxu0
      %908 = vdwg.mxu0
      %v909 = vmax.f32 %v903, 0.0
      %v910 = vmax.f32 %v906, 0.0
      %v911 = vld [vmem:[%s488] sm:$0xff]
      %v912 = vld [vmem:[%s488 + $0x8] sm:$0xff]
      %v913 = vadd.f32 %v909, %v911
      %v914 = vadd.f32 %v910, %v912
      %v915 = vpack.c.bf16 %v914, %v913
      %v916 = vld [vmem:[%s8] sm:$0xf]
      %v917 = vld [vmem:[%s8 + $0x4] sm:$0xf]
      %v918 = vld [vmem:[%s8 + $0x8] sm:$0xf]
      %v919 = vld [vmem:[%s8 + $0xc] sm:$0xf]
      %v920 = vld [vmem:[%s8 + $0x10] sm:$0xf]
      %v921 = vld [vmem:[%s8 + $0x14] sm:$0xf]
      %v922 = vld [vmem:[%s8 + $0x18] sm:$0xf]
      %v923 = vld [vmem:[%s8 + $0x1c] sm:$0xf]
      %v924 = vld [vmem:[%s8 + $0x20] sm:$0xf]
      %v925 = vld [vmem:[%s8 + $0x24] sm:$0xf]
      %v926 = vld [vmem:[%s8 + $0x28] sm:$0xf]
      %v927 = vld [vmem:[%s8 + $0x2c] sm:$0xf]
      %v928 = vld [vmem:[%s8 + $0x30] sm:$0xf]
      %v929 = vld [vmem:[%s8 + $0x34] sm:$0xf]
      %v930 = vld [vmem:[%s8 + $0x38] sm:$0xf]
      %v931 = vld [vmem:[%s8 + $0x3c] sm:$0xf]
      %v932 = vld [vmem:[%s9] sm:$0x1]
      %v934 = vlaneseq
      %v935 = vshrl.u32 %v934, 7
      %v936 = vsub.s32 0, %v935
      %v937 = vrot.slane %v932, %v936
      %v955 = vunpack.c.l.b16 %v916
      %v956 = vunpack.c.l.b16 %v917
      %v957 = vunpack.c.l.b16 %v918
      %v958 = vunpack.c.l.b16 %v919
      %v959 = vunpack.c.l.b16 %v920
      %v960 = vunpack.c.l.b16 %v921
      %v961 = vunpack.c.l.b16 %v922
      %v962 = vunpack.c.l.b16 %v923
      %v963 = vunpack.c.l.b16 %v924
      %v964 = vunpack.c.l.b16 %v925
      %v965 = vunpack.c.l.b16 %v926
      %v966 = vunpack.c.l.b16 %v927
      %v967 = vunpack.c.l.b16 %v928
      %v968 = vunpack.c.l.b16 %v929
      %v969 = vunpack.c.l.b16 %v930
      %v970 = vunpack.c.l.b16 %v931
      %v971 = vpack.c.b16 %v956, %v955
      %v972 = vpack.c.b16 %v958, %v957
      %v973 = vpack.c.b16 %v960, %v959
      %v974 = vpack.c.b16 %v962, %v961
      %v975 = vpack.c.b16 %v964, %v963
      %v976 = vpack.c.b16 %v966, %v965
      %v977 = vpack.c.b16 %v968, %v967
      %v978 = vpack.c.b16 %v970, %v969
      %987 = vmatprep.subr.bf16.mxu0 0
      %988 = vmatpush1.bf16.msra.mxu0 %v971
      %989 = vmatprep.subr.bf16.mxu0 0
      %990 = vmatpush1.bf16.msra.mxu0 %v972
      %991 = vmatprep.subr.bf16.mxu0 0
      %992 = vmatpush1.bf16.msra.mxu0 %v973
      %993 = vmatprep.subr.bf16.mxu0 0
      %994 = vmatpush1.bf16.msra.mxu0 %v974
      %995 = vmatprep.subr.bf16.mxu0 0
      %996 = vmatpush1.bf16.msra.mxu0 %v975
      %997 = vmatprep.subr.bf16.mxu0 0
      %998 = vmatpush1.bf16.msra.mxu0 %v976
      %999 = vmatprep.subr.bf16.mxu0 0
      %1000 = vmatpush1.bf16.msra.mxu0 %v977
      %1001 = vmatprep.subr.bf16.mxu0 0
      %1002 = vmatpush1.bf16.msra.mxu0 %v978
      %1003 = vmatprep.subr.bf16.mxu0 0
      %1004 = vmatpush1.bf16.msra.mxu0 0
      %1005 = vmatprep.subr.bf16.mxu0 0
      %1006 = vmatpush1.bf16.msra.mxu0 0
      %1007 = vmatprep.subr.bf16.mxu0 0
      %1008 = vmatpush1.bf16.msra.mxu0 0
      %1009 = vmatprep.subr.bf16.mxu0 0
      %1010 = vmatpush1.bf16.msra.mxu0 0
      %1011 = vmatprep.subr.bf16.mxu0 0
      %1012 = vmatpush1.bf16.msra.mxu0 0
      %1013 = vmatprep.subr.bf16.mxu0 0
      %1014 = vmatpush1.bf16.msra.mxu0 0
      %1015 = vmatprep.subr.bf16.mxu0 0
      %1016 = vmatpush1.bf16.msra.mxu0 0
      %1017 = vmatprep.subr.bf16.mxu0 0
      %1018 = vmatpush1.bf16.msra.mxu0 0
      %1019 = vmatprep.mubr.bf16.mxu0 0
      %1020 = vmatmul.mubr.bf16.gmra.mrb[0].mxu0 %v915
      %v1021 = vpop.f32.mrb[0].mxu0
      %v1022 = vadd.f32 %v937, %v1021
      %v1023 = vpop.f32.mrb[0].mxu0
      %v1024 = vpop.f32.mrb[0].mxu0
      %v1025 = vadd.f32 %v937, %v1024
      %v1026 = vpop.f32.mrb[0].mxu0
      %1027 = vdwg.mxu0
      %v1028 = vmax.f32 %v1022, 0.0
      %v1029 = vmax.f32 %v1025, 0.0
      %v1030 = vpack.c.bf16 %v1029, %v1028
      %v1031 = vld [vmem:[%s10] sm:$0xf]
      %v1032 = vld [vmem:[%s10 + $0x4] sm:$0xf]
      %v1033 = vld [vmem:[%s10 + $0x8] sm:$0xf]
      %v1034 = vld [vmem:[%s10 + $0xc] sm:$0xf]
      %v1035 = vld [vmem:[%s10 + $0x10] sm:$0xf]
      %v1036 = vld [vmem:[%s10 + $0x14] sm:$0xf]
      %v1037 = vld [vmem:[%s10 + $0x18] sm:$0xf]
      %v1038 = vld [vmem:[%s10 + $0x1c] sm:$0xf]
      %v1039 = vld [vmem:[%s10 + $0x20] sm:$0xf]
      %v1040 = vld [vmem:[%s10 + $0x24] sm:$0xf]
      %v1041 = vld [vmem:[%s10 + $0x28] sm:$0xf]
      %v1042 = vld [vmem:[%s10 + $0x2c] sm:$0xf]
      %v1043 = vld [vmem:[%s10 + $0x30] sm:$0xf]
      %v1044 = vld [vmem:[%s10 + $0x34] sm:$0xf]
      %v1045 = vld [vmem:[%s10 + $0x38] sm:$0xf]
      %v1046 = vld [vmem:[%s10 + $0x3c] sm:$0xf]
      %v1047 = vld [vmem:[%s11] sm:$0x1]
      %v1049 = vlaneseq
      %v1050 = vshrl.u32 %v1049, 7
      %v1051 = vsub.s32 0, %v1050
      %v1052 = vrot.slane %v1047, %v1051
      %v1070 = vunpack.c.l.b16 %v1031
      %v1071 = vunpack.c.l.b16 %v1032
      %v1072 = vunpack.c.l.b16 %v1033
      %v1073 = vunpack.c.l.b16 %v1034
      %v1074 = vunpack.c.l.b16 %v1035
      %v1075 = vunpack.c.l.b16 %v1036
      %v1076 = vunpack.c.l.b16 %v1037
      %v1077 = vunpack.c.l.b16 %v1038
      %v1078 = vunpack.c.l.b16 %v1039
      %v1079 = vunpack.c.l.b16 %v1040
      %v1080 = vunpack.c.l.b16 %v1041
      %v1081 = vunpack.c.l.b16 %v1042
      %v1082 = vunpack.c.l.b16 %v1043
      %v1083 = vunpack.c.l.b16 %v1044
      %v1084 = vunpack.c.l.b16 %v1045
      %v1085 = vunpack.c.l.b16 %v1046
      %v1086 = vpack.c.b16 %v1071, %v1070
      %v1087 = vpack.c.b16 %v1073, %v1072
      %v1088 = vpack.c.b16 %v1075, %v1074
      %v1089 = vpack.c.b16 %v1077, %v1076
      %v1090 = vpack.c.b16 %v1079, %v1078
      %v1091 = vpack.c.b16 %v1081, %v1080
      %v1092 = vpack.c.b16 %v1083, %v1082
      %v1093 = vpack.c.b16 %v1085, %v1084
      %1102 = vmatprep.subr.bf16.mxu0 0
      %1103 = vmatpush1.bf16.msra.mxu0 %v1086
      %1104 = vmatprep.subr.bf16.mxu0 0
      %1105 = vmatpush1.bf16.msra.mxu0 %v1087
      %1106 = vmatprep.subr.bf16.mxu0 0
      %1107 = vmatpush1.bf16.msra.mxu0 %v1088
      %1108 = vmatprep.subr.bf16.mxu0 0
      %1109 = vmatpush1.bf16.msra.mxu0 %v1089
      %1110 = vmatprep.subr.bf16.mxu0 0
      %1111 = vmatpush1.bf16.msra.mxu0 %v1090
      %1112 = vmatprep.subr.bf16.mxu0 0
      %1113 = vmatpush1.bf16.msra.mxu0 %v1091
      %1114 = vmatprep.subr.bf16.mxu0 0
      %1115 = vmatpush1.bf16.msra.mxu0 %v1092
      %1116 = vmatprep.subr.bf16.mxu0 0
      %1117 = vmatpush1.bf16.msra.mxu0 %v1093
      %1118 = vmatprep.subr.bf16.mxu0 0
      %1119 = vmatpush1.bf16.msra.mxu0 0
      %1120 = vmatprep.subr.bf16.mxu0 0
      %1121 = vmatpush1.bf16.msra.mxu0 0
      %1122 = vmatprep.subr.bf16.mxu0 0
      %1123 = vmatpush1.bf16.msra.mxu0 0
      %1124 = vmatprep.subr.bf16.mxu0 0
      %1125 = vmatpush1.bf16.msra.mxu0 0
      %1126 = vmatprep.subr.bf16.mxu0 0
      %1127 = vmatpush1.bf16.msra.mxu0 0
      %1128 = vmatprep.subr.bf16.mxu0 0
      %1129 = vmatpush1.bf16.msra.mxu0 0
      %1130 = vmatprep.subr.bf16.mxu0 0
      %1131 = vmatpush1.bf16.msra.mxu0 0
      %1132 = vmatprep.subr.bf16.mxu0 0
      %1133 = vmatpush1.bf16.msra.mxu0 0
      %1134 = vmatprep.mubr.bf16.mxu0 0
      %1135 = vmatmul.mubr.bf16.gmra.mrb[0].mxu0 %v1030
      %v1136 = vpop.f32.mrb[0].mxu0
      %v1137 = vadd.f32 %v1052, %v1136
      %v1138 = vpop.f32.mrb[0].mxu0
      %v1139 = vpop.f32.mrb[0].mxu0
      %v1140 = vadd.f32 %v1052, %v1139
      %v1141 = vpop.f32.mrb[0].mxu0
      %1142 = vdwg.mxu0
      %v1143 = vmax.f32 %v1137, 0.0
      %v1144 = vmax.f32 %v1140, 0.0
      %v1145 = vld [vmem:[%s12] sm:$0x1]
      %v1147 = vlaneseq
      %v1148 = vshrl.u32 %v1147, 7
      %v1149 = vsub.s32 0, %v1148
      %v1150 = vrot.slane %v1145, %v1149
      %v1152 = vmul.f32 %v1143, %v1150
      %v1153 = vmul.f32 %v1144, %v1150
      %1154 = vadd.xlane.f32.xlu0 %v1152
      %v1155 = vpop.xlane.xlu0 %1154
      %1156 = vadd.xlane.f32.xlu0 %v1153
      %v1157 = vpop.xlane.xlu0 %1156
      %v1158 = vld [vmem:[%s13] sm:$0x1]
      %v1160 = vlaneseq
      %v1161 = vshrl.u32 %v1160, 7
      %v1162 = vsub.s32 0, %v1161
      %v1163 = vrot.slane %v1158, %v1162
      %v1165 = vadd.f32 %v1155, %v1163
      %v1166 = vadd.f32 %v1157, %v1163
      %1167 = vst [vmem:[%s494] sm:$0xff] %v1165
      %1168 = vst [vmem:[%s494 + $0x8] sm:$0xff] %v1166
      %s1169 = smul.u32 2, %s25
      %p1170 = scmp.lt.s32.totalorder %s1169, 3
      %s1171 = scalar_select %p1170, %s1169, 3
      %s1172 = smul.addr %s1171, 8
      %s1173 = scalar_lea.vmem %s14, %s1172
      // Predicated region
      $region77: #{fwd.1} parent=75 // pred_check
        %p1174 = pneg %p347
      $region78: #{fwd.1} parent=75 // pred_check_branch
        %1176 = sbr.rel (%p1174) target = $region80
      $region79: #{fwd.1} parent=75 // pred_region
        %s1177 = smul.u32 2, %s25
      $region80: #{fwd.1} parent=75 // pred_fallthru
        _
    $region76: #{fwd.1} parent=5 // pred_fallthru
      _
    %p1178 = scmp.le.s32.totalorder 2, %s20
    // Predicated region
    $region81: #{fwd.1} parent=5 // pred_check
      %p1179 = pneg %p1178
    $region82: #{fwd.1} parent=5 // pred_check_branch
      %1181 = sbr.rel (%p1179) target = $region84
    $region83: #{fwd.1} parent=5 // pred_region
      %s1182 = ssub.s32 %s20, 2
      // Predicated region
      $region85: #{fwd.1} parent=83 // pred_check
        %p1183 = pneg %p353
      $region86: #{fwd.1} parent=83 // pred_check_branch
        %1185 = sbr.rel (%p1183) target = $region88
      $region87: #{fwd.1} parent=83 // pred_region
        %s1186 = smul.u32 2, %s26
        %p1187 = scmp.lt.s32.totalorder %s1186, 3
        %s1188 = scalar_select %p1187, %s1186, 3
        %s1189 = smul.addr %s1188, 8
        %s1190 = scalar_lea.vmem %s14, %s1189
      $region88: #{fwd.1} parent=83 // pred_fallthru
        _
    $region84: #{fwd.1} parent=5 // pred_fallthru
      _
  $region6: #{fwd.1} parent=0 // loop_footer
    %s24 = sadd.s32 1, %s20
  $region7: #{fwd.1} parent=0 // loop_footer_branch
    %19 = sbr.rel target = $region3
  $region8: #{fwd.1} parent=0 // loop_exit
    _

</llo_original>
